<compile_context>
chip_gen: v7x
topology: tpu7x:2x2x1
jax: 0.10.0
libtpu: 0.0.40
codegen_flags: <defaults>
</compile_context>

<pallas_src>
import math
import functools

import jax
import jax.numpy as jnp
from jax.experimental import pallas as pl
from jax.experimental.pallas import tpu as pltpu


def make_positional_encoding(embed_dim: int, max_len: int = 1000) -> jnp.ndarray:
    """Builds the (1, max_len, embed_dim) sinusoidal table, same math as PyTorch."""
    assert embed_dim % 2 == 0
    even = jnp.arange(0, embed_dim, 2, dtype=jnp.float32)              # (D/2,)
    pos = jnp.arange(0, max_len, dtype=jnp.float32)[:, None]           # (max_len, 1)
    coef = jnp.exp(math.log(10000.0) * (-1.0) * even / embed_dim)      # (D/2,)
    angles = pos * coef                                                 # (max_len, D/2)
    pe = jnp.zeros((max_len, embed_dim), dtype=jnp.float32)
    pe = pe.at[:, 0::2].set(jnp.sin(angles))
    pe = pe.at[:, 1::2].set(jnp.cos(angles))
    return pe[None, :, :]                                               # (1, max_len, D)


# ---------------------------------------------------------------------------
# Dropout mask: tiling-independent counter-based hash (no TPU-only PRNG)
# ---------------------------------------------------------------------------

def _keep_mask(shape, starts, full_dims, seed_u32, threshold):
    """keep[e] = hash(global_linear_index(e), seed) >= threshold, P(keep)=1-p.

    Uses only int32 iota + uint32 mul/xor/shift (VPU), so it lowers on the TPU
    Mosaic backend AND the CPU interpreter, and the mask does not depend on the
    chosen tiling (it is a function of the element's global index only).
    """
    strides = pl.strides_from_shape(tuple(full_dims))
    lin = jnp.zeros(shape, dtype=jnp.uint32)
    for ax in range(len(shape)):
        g = jax.lax.broadcasted_iota(jnp.int32, shape, ax) + starts[ax]
        lin = lin + g.astype(jnp.uint32) * jnp.uint32(strides[ax] & 0xFFFFFFFF)
    # murmur3-style finalizer
    h = lin * jnp.uint32(0x9E3779B9) + seed_u32
    h = h ^ (h >> 16)
    h = h * jnp.uint32(0x7FEB352D)
    h = h ^ (h >> 15)
    h = h * jnp.uint32(0x846CA68B)
    h = h ^ (h >> 16)
    return h >= jnp.uint32(threshold)


# ---------------------------------------------------------------------------
# Kernels
# ---------------------------------------------------------------------------

def _add_pe_kernel(x_ref, pe_ref, o_ref):
    # Eval-mode forward: out = x + pe, add done in f32 (PE buffer stays f32).
    y = x_ref[...].astype(jnp.float32) + pe_ref[...].astype(jnp.float32)
    o_ref[...] = y.astype(o_ref.dtype)


def _add_pe_dropout_kernel_2d(seed_ref, x_ref, pe_ref, o_ref, *,
                              threshold, scale, bn, tf, full_n, full_f):
    # Training-mode forward on the lane-dense flat (N, F) view.
    y = x_ref[...].astype(jnp.float32) + pe_ref[...].astype(jnp.float32)
    row0 = pl.program_id(1) * bn          # inner grid axis = batch tiles
    col0 = pl.program_id(0) * tf          # outer grid axis = flat tiles
    seed_u32 = seed_ref[0].astype(jnp.uint32)
    keep = _keep_mask(y.shape, (row0, col0), (full_n, full_f), seed_u32, threshold)
    o_ref[...] = jnp.where(keep, y * scale, 0.0).astype(o_ref.dtype)


def _add_pe_dropout_kernel_3d(seed_ref, x_ref, pe_ref, o_ref, *,
                              threshold, scale, bn, ts, full_n, full_s, full_d):
    # Training-mode forward on the (N, S, D) fallback tiling (F % 128 != 0).
    y = x_ref[...].astype(jnp.float32) + pe_ref[...].astype(jnp.float32)
    n0 = pl.program_id(1) * bn
    s0 = pl.program_id(0) * ts
    seed_u32 = seed_ref[0].astype(jnp.uint32)
    keep = _keep_mask(y.shape, (n0, s0, 0), (full_n, full_s, full_d),
                      seed_u32, threshold)
    o_ref[...] = jnp.where(keep, y * scale, 0.0).astype(o_ref.dtype)


# ---------------------------------------------------------------------------
# Tiling helpers
# ---------------------------------------------------------------------------

def _sublane_multiple(itemsize: int) -> int:
    # f32 -> 8, bf16 -> 16, int8/fp8 -> 32 (sub-32-bit dtypes pack along sublanes).
    return {4: 8, 2: 16, 1: 32}.get(itemsize, 8)


def _largest_divisor(n: int, cap: int, multiple_of: int = 1):
    """Largest divisor of n that is <= cap and a multiple of `multiple_of`."""
    t = (min(n, cap) // multiple_of) * multiple_of
    while t >= multiple_of:
        if n % t == 0:
            return t
        t -= multiple_of
    return None


def _pick_batch_tile(n: int, itemsize: int, cap: int = 256) -> int:
    m = _sublane_multiple(itemsize)
    if n % m != 0:
        return n                       # full dim is always a legal sublane block
    return _largest_divisor(n, cap, m) or n


def _pick_flat_tile(f: int, bn: int, itemsize: int, target_bytes: int) -> int:
    # Caller guarantees f % 128 == 0.
    cap = max(128, target_bytes // max(bn * itemsize, 1))
    if f <= cap:
        return f
    return _largest_divisor(f, cap, 128) or 128


def _vmem_budget():
    """(target block bytes, vmem_limit_bytes) per chip generation."""
    try:
        vmem = getattr(pltpu.get_tpu_info(), "vmem_capacity_bytes", 64 << 20)
    except Exception:
        vmem = 64 << 20
    if vmem >= (100 << 20):            # v5e / v6e: 128 MiB physical VMEM
        return 8 << 20, 64 << 20
    return 4 << 20, 48 << 20           # v7x (64 MiB / TC) or unknown: conservative


# ---------------------------------------------------------------------------
# Wrapper
# ---------------------------------------------------------------------------

def positional_encoding_forward(x, pe, *, dropout_p: float = 0.1,
                                training: bool = False, seed: int = 0):
    """x: (N, S, D), pe: (1, max_len, D) -> (N, S, D)."""
    N, S, D = x.shape
    F = S * D
    itemsize = jnp.dtype(x.dtype).itemsize

    use_dropout = training and dropout_p > 0.0
    if use_dropout and dropout_p >= 1.0:
        # keep prob is 0 -> everything dropped (avoid 1/(1-p) inf/NaN).
        return jnp.zeros((N, S, D), dtype=x.dtype)

    # NOTE: in a real model, hoist/cache this f32 PE slice per (S, D) outside
    # the per-step path; it is a tiny slice here.
    pe_f32 = pe[0, :S, :].astype(jnp.float32)               # (S, D), f32 add

    target_block_bytes, vmem_limit = _vmem_budget()
    bN = _pick_batch_tile(N, itemsize)

    if F % 128 == 0:
        # Preferred: lane-dense flat (N, F) view -> unmasked vst.
        tF = _pick_flat_tile(F, bN, itemsize, target_block_bytes)
        # PE index (0, fi) is constant along the inner (batch) axis, so Pallas
        # fetches each PE tile exactly once instead of once per batch tile.
        grid = (F // tF, N // bN)
        x_arg, pe_arg = x.reshape(N, F), pe_f32.reshape(1, F)
        in_specs = [pl.BlockSpec((bN, tF), lambda fi, ni, *rest: (ni, fi)),
                    pl.BlockSpec((1, tF), lambda fi, ni, *rest: (0, fi))]
        out_spec = pl.BlockSpec((bN, tF), lambda fi, ni, *rest: (ni, fi))
        out_shape = jax.ShapeDtypeStruct((N, F), x.dtype)
        drop_kernel = functools.partial(_add_pe_dropout_kernel_2d,
                                        bn=bN, tf=tF, full_n=N, full_f=F)
    else:
        # Robust fallback: (bN, tS, D) blocks, D kept full as the lane dim,
        # block size bounded by the byte budget (no unbounded full-F block).
        m = _sublane_multiple(itemsize)
        cap_s = max(1, target_block_bytes // max(D * itemsize, 1))
        if S % m != 0 or S <= cap_s:
            tS = S
        else:
            tS = _largest_divisor(S, cap_s, m) or S
        cap_n = max(1, target_block_bytes // max(tS * D * itemsize, 1))
        bN = _largest_divisor(N, min(N, cap_n), 1) or 1   # leading dim: unconstrained
        grid = (S // tS, N // bN)
        x_arg, pe_arg = x, pe_f32[None]                   # (1, S, D)
        in_specs = [pl.BlockSpec((bN, tS, D), lambda si, ni, *rest: (ni, si, 0)),
                    pl.BlockSpec((1, tS, D), lambda si, ni, *rest: (0, si, 0))]
        out_spec = pl.BlockSpec((bN, tS, D), lambda si, ni, *rest: (ni, si, 0))
        out_shape = jax.ShapeDtypeStruct((N, S, D), x.dtype)
        drop_kernel = functools.partial(_add_pe_dropout_kernel_3d,
                                        bn=bN, ts=tS, full_n=N, full_s=S, full_d=D)

    cost = pl.CostEstimate(
        flops=2 * N * F,
        transcendentals=0,
        # x read + out write + ONE pass over the f32 PE table (grid-reorder
        # eliminates the repeated PE fetches).
        bytes_accessed=2 * N * F * itemsize + F * 4,
    )
    cparams = pltpu.CompilerParams(
        dimension_semantics=("parallel", "parallel"),   # shards across v7x TCs
        vmem_limit_bytes=vmem_limit,
    )

    if not use_dropout:
        out = pl.pallas_call(
            _add_pe_kernel,
            out_shape=out_shape,
            grid_spec=pltpu.PrefetchScalarGridSpec(
                num_scalar_prefetch=0, grid=grid,
                in_specs=in_specs, out_specs=out_spec),
            compiler_params=cparams,
            cost_estimate=cost,
        )(x_arg, pe_arg)
        return out.reshape(N, S, D)

    threshold = min(int(round(dropout_p * 4294967296.0)), 4294967295)
    scale = 1.0 / (1.0 - dropout_p)
    seed_arr = jnp.array([seed], dtype=jnp.int32)
    kern = functools.partial(drop_kernel, threshold=threshold, scale=scale)
    out = pl.pallas_call(
        kern,
        out_shape=out_shape,
        grid_spec=pltpu.PrefetchScalarGridSpec(
            num_scalar_prefetch=1, grid=grid,
            in_specs=in_specs, out_specs=out_spec),
        compiler_params=cparams,
        cost_estimate=cost,
    )(seed_arr, x_arg, pe_arg)
    return out.reshape(N, S, D)


# ---------------------------------------------------------------------------
# Main
# ---------------------------------------------------------------------------

if __name__ == "__main__":
    N, S, D = 2, 8, 32
    max_len = 1000
    p = 0.1

    key = jax.random.PRNGKey(0)
    x = jax.random.normal(key, (N, S, D), dtype=jnp.float32)
    pe = make_positional_encoding(D, max_len=max_len)

    # Eval-mode forward (dropout is identity), matches PyTorch module.eval().
    out = positional_encoding_forward(x, pe, dropout_p=p, training=False)
    out = jax.block_until_ready(out)
    ref = x + pe[:, :S, :]
    assert out.shape == (N, S, D)
    assert jnp.allclose(out, ref, atol=1e-6, rtol=1e-6), "eval mismatch vs reference"

    # Training-mode forward: kept entries must equal ref / (1 - p), rest zero.
    out_tr = positional_encoding_forward(x, pe, dropout_p=p, training=True, seed=1234)
    out_tr = jax.block_until_ready(out_tr)
    assert out_tr.shape == (N, S, D)
    scaled_ref = ref / (1.0 - p)
    kept = out_tr != 0
    assert jnp.allclose(jnp.where(kept, out_tr, scaled_ref), scaled_ref,
                        atol=1e-5, rtol=1e-5), "training kept-values mismatch"
    drop_frac = 1.0 - float(jnp.mean(kept.astype(jnp.float32)))
    assert 0.0 <= drop_frac < 0.5, "implausible dropout fraction"

    # TODO(synk): training dropout uses a counter-based hash mask, so the exact
    # mask bitstream differs from torch's RNG (keep-prob/scale semantics identical).
    print("KERNEL_OK")
</pallas_src>

<mosaic_0001>
module attributes {stable_mosaic.version = 11 : i64} {
  func.func @_add_pe_kernel(%arg0: i32, %arg1: i32, %arg2: memref<2x256xf32, #tpu.memory_space<vmem>>, %arg3: memref<1x256xf32, #tpu.memory_space<vmem>>, %arg4: memref<2x256xf32, #tpu.memory_space<vmem>>) attributes {dimension_semantics = [#tpu.dimension_semantics<parallel>, #tpu.dimension_semantics<parallel>], iteration_bounds = array<i64: 1, 1>, scalar_prefetch = 0 : i64, scratch_operands = 0 : i64, tpu.core_type = #tpu.core_type<tc>, window_params = [{transform_indices = @transform_0, window_bounds = array<i64: 2, 256>}, {transform_indices = @transform_1, window_bounds = array<i64: 1, 256>}, {transform_indices = @transform_2, window_bounds = array<i64: 2, 256>}]} {
    %c0 = arith.constant 0 : index
    %c0_0 = arith.constant 0 : index
    %0 = vector.load %arg2[%c0, %c0_0] : memref<2x256xf32, #tpu.memory_space<vmem>>, vector<2x256xf32>
    %c0_1 = arith.constant 0 : index
    %c0_2 = arith.constant 0 : index
    %1 = vector.load %arg3[%c0_1, %c0_2] : memref<1x256xf32, #tpu.memory_space<vmem>>, vector<1x256xf32>
    %2 = vector.broadcast %1 : vector<1x256xf32> to vector<2x256xf32>
    %3 = arith.addf %0, %2 : vector<2x256xf32>
    %c0_3 = arith.constant 0 : index
    %c0_4 = arith.constant 0 : index
    %4 = vector.load %arg4[%c0_3, %c0_4] : memref<2x256xf32, #tpu.memory_space<vmem>>, vector<2x256xf32>
    tpu.vector_store %arg4[%c0_3, %c0_4], %3 {strides = array<i32>} : memref<2x256xf32, #tpu.memory_space<vmem>>, vector<2x256xf32>,
    return
  }
  func.func @transform_0(%arg0: i32, %arg1: i32) -> (i32, i32) {
    %c0_i32 = arith.constant 0 : i32
    return %arg1, %arg0 : i32, i32
  }
  func.func @transform_1(%arg0: i32, %arg1: i32) -> (i32, i32) {
    %c0_i32 = arith.constant 0 : i32
    %c0_i32_0 = arith.constant 0 : i32
    return %c0_i32, %arg0 : i32, i32
  }
  func.func @transform_2(%arg0: i32, %arg1: i32) -> (i32, i32) {
    %c0_i32 = arith.constant 0 : i32
    return %arg1, %arg0 : i32, i32
  }
}

</mosaic_0001>

<llo_original>
// kernel: tpu_custom_call.1
$region0: #{tpu_custom_call.1}
  #allocation0 [shape = 'u32[]', space=smem, size = 0x4, offset = 0x4, fixed_abs, tag = 'smem constant byte address 0x4 - core index']
  #allocation1 [shape = 'u32[144,128]{1,0:T(1,128)}', space=vmem, size = 0x12000, scoped, tag = 'internal scratch']
  %s0 = inlined_call_operand.hbm [shape: f32[2,256], index: 0, kind: input, shape index: {}]
  %s1 = inlined_call_operand.vmem [shape: f32[1,256], index: 1, kind: input, shape index: {}]
  %s2 = inlined_call_operand.hbm [shape: f32[2,256], index: 2, kind: output, shape index: {}]
  %s3 = sld [smem:[#allocation0]]
  $region22: #{tpu_custom_call.1} parent=0
    _
  %s5 = ssub.s32 1, %s3
  %s6 = scalar_select 0, %s5, %s3
  $region1: #{tpu_custom_call.1} parent=0
    #allocation2 [shape = 'u8[2048]{0}', space=vmem, size = 0x800, scoped, tag = 'input window, operand 0, single buffered']
    #allocation3 [shape = 's32[1]{0}', space=sflag, size = 0x4, scoped, tag = 'scoped memory for tpu_custom_call.1']
    #allocation4 [shape = 's32[1]{0}', space=sflag, size = 0x4, scoped, tag = 'scoped memory for tpu_custom_call.1']
    #allocation5 [shape = 'u8[2048]{0}', space=vmem, size = 0x800, scoped, tag = 'output window, operand 0, single buffered']
    %7 = vsyncpa [#allocation3], 0
    %8 = vsyncpa [#allocation4], 0
    // Predicated region
    $region2: #{tpu_custom_call.1} parent=1 // pred_check
      _
    $region3: #{tpu_custom_call.1} parent=1 // pred_check_branch
      %10 = sbr.rel (0) target = $region5
    $region4: #{tpu_custom_call.1} parent=1 // pred_region
      %s12 = ssub.s32 64, 64
      %13 = vsyncadd [#allocation3], %s12
      %s15 = sshll.u32 [#allocation2], 4
      %s16 = int_to_ptr.vmem [resolvable:$true] %s15
      %18 = dma.hbm_to_vmem [thread:$0]  %s0, 64, %s16, [#allocation3]
    $region5: #{tpu_custom_call.1} parent=1 // pred_fallthru
      _
    // Predicated region
    $region6: #{tpu_custom_call.1} parent=1 // pred_check
      _
    $region7: #{tpu_custom_call.1} parent=1 // pred_check_branch
      %20 = sbr.rel (0) target = $region9
    $region8: #{tpu_custom_call.1} parent=1 // pred_region
      _
    $region9: #{tpu_custom_call.1} parent=1 // pred_fallthru
      _
    // Predicated region
    $region10: #{tpu_custom_call.1} parent=1 // pred_check
      _
    $region11: #{tpu_custom_call.1} parent=1 // pred_check_branch
      %22 = sbr.rel (0) target = $region13
    $region12: #{tpu_custom_call.1} parent=1 // pred_region
      %23 = dma.done [#allocation3], 64
    $region13: #{tpu_custom_call.1} parent=1 // pred_fallthru
      _
    %v24 = vld [vmem:[#allocation2] sm:$0xf]
    %v25 = vld [vmem:[%s1] sm:$0x3]
    %v27 = vlaneseq
    %v28 = vshrl.u32 %v27, 7
    %v29 = vsub.s32 0, %v28
    %v30 = vrot.slane %v25, %v29
    %v31 = vlaneseq
    %v32 = vshrl.u32 %v31, 7
    %v33 = vsub.s32 1, %v32
    %v34 = vrot.slane %v25, %v33
    %v35 = vcombine.low %v30, %v34
    %v37 = vunpack.c.l.s4 1983009808
    %v38 = vunpack.c.0.s8 %v37
    %v39 = vlaneseq
    %v40 = vshrl.u32 %v39, 7
    %v41 = vsub.s32 %v38, %v40
    %v42 = vrot.slane %v35, %v41
    %v44 = vadd.f32 %v24, %v42
    %45 = vst [vmem:[#allocation5] sm:$0xf] %v44
    // Predicated region
    $region14: #{tpu_custom_call.1} parent=1 // pred_check
      _
    $region15: #{tpu_custom_call.1} parent=1 // pred_check_branch
      %47 = sbr.rel (0) target = $region17
    $region16: #{tpu_custom_call.1} parent=1 // pred_region
      %s49 = ssub.s32 64, 64
      %50 = vsyncadd [#allocation4], %s49
      %s52 = sshll.u32 [#allocation5], 4
      %s53 = int_to_ptr.vmem [resolvable:$true] %s52
      %55 = dma.vmem_to_hbm [thread:$0]  %s53, 64, %s2, [#allocation4]
    $region17: #{tpu_custom_call.1} parent=1 // pred_fallthru
      _
    // Predicated region
    $region18: #{tpu_custom_call.1} parent=1 // pred_check
      _
    $region19: #{tpu_custom_call.1} parent=1 // pred_check_branch
      %57 = sbr.rel (0) target = $region21
    $region20: #{tpu_custom_call.1} parent=1 // pred_region
      %58 = dma.done [#allocation4], 64
    $region21: #{tpu_custom_call.1} parent=1 // pred_fallthru
      _
    %59 = vsyncpa [#allocation3], 1
    %60 = vsyncpa [#allocation4], 1

</llo_original>
